<compile_context>
chip_gen: v7x
topology: tpu7x:2x2x1
jax: 0.10.0
libtpu: 0.0.40
codegen_flags: <defaults>
</compile_context>

<pallas_src>
import functools

import jax
import jax.numpy as jnp
from jax.experimental import pallas as pl
from jax.experimental.pallas import tpu as pltpu


def _round_up(x, m):
    return ((x + m - 1) // m) * m


def _cdiv(a, b):
    return (a + b - 1) // b


def _bce_kernel(pred_ref, label_ref, out_ref, acc_ref, *,
                ignore_label, scale, d, td, ksteps_per_split, need_col_mask):
    """One (TB, TD) tile of stable BCE-with-logits, accumulated over the D axis."""
    c = pl.program_id(0)   # D-split id (parallel; used by tiny-N two-core path)
    k = pl.program_id(2)   # reduction step within this split

    @pl.when(k == 0)
    def _():
        acc_ref[...] = jnp.zeros_like(acc_ref)

    pred = pred_ref[...].astype(jnp.float32)
    label = label_ref[...].astype(jnp.float32)

    # Stable BCE-with-logits: relu(x) - x*y + softplus(-|x|),
    # softplus(-|x|) = log1p(exp(-|x|)); exp/log1p ride the EUP slot.
    # (No need to zero ignored labels first: the final select zeroes the loss
    # and ignore_label is finite, so pred*label stays finite.)
    loss = (jnp.maximum(pred, 0.0) - pred * label
            + jnp.log1p(jnp.exp(-jnp.abs(pred))))

    keep = label != jnp.float32(ignore_label)
    if need_col_mask:
        # Mask ragged / replayed columns of the last D tile (compile-time d).
        col = jax.lax.broadcasted_iota(jnp.int32, pred.shape, 1)
        kglobal = c * ksteps_per_split + k
        keep = jnp.logical_and(keep, (col + kglobal * td) < d)
    loss = jnp.where(keep, loss, 0.0)

    # Lane-dense accumulation: tree-add the tile's 128-lane chunks (VPU only);
    # the cross-lane reduce happens once per row-block at the last k step.
    nchunks = td // 128
    chunks = [loss[:, i * 128:(i + 1) * 128] for i in range(nchunks)]
    while len(chunks) > 1:
        nxt = [a + b for a, b in zip(chunks[0::2], chunks[1::2])]
        if len(chunks) % 2:
            nxt.append(chunks[-1])
        chunks = nxt
    acc_ref[...] += chunks[0]

    @pl.when(k == pl.num_programs(2) - 1)
    def _():
        # weight / (C*H*W) folded into one scalar multiply at finalize.
        row_sum = jnp.sum(acc_ref[...], axis=-1, keepdims=True)
        out_ref[...] = row_sum * jnp.float32(scale)


def sigmoid_bce_loss(pred, label, *, ignore_label=-1, weight=1.0):
    """Per-sample sigmoid BCE loss. pred: (N, C, H, W); label viewable to the
    same shape (any dtype; cast happens in-kernel). Returns (N,) float32
    (mean over all non-batch dims, ignored labels contribute 0)."""
    n = pred.shape[0]
    d = 1
    for s in pred.shape[1:]:
        d *= s
    assert label.size == pred.size

    pred2d = pred.reshape(n, d)
    label2d = label.reshape(n, d)   # keep native dtype; cast in-kernel

    # ---- tile sizing -------------------------------------------------------
    # TD: lane-dense, <= 2048, minimal column padding for awkward D.
    td = _round_up(_cdiv(d, max(1, _cdiv(d, 2048))), 128)
    # TB: ~2 MiB f32 pred block.
    tb = _round_up(max(1, (2 << 20) // (td * 4)), 8)
    if n >= 32:
        # Guarantee >= 4 batch blocks so v7x's two TensorCores both get work.
        tb = min(tb, _round_up(_cdiv(n, 4), 8))
    if tb >= n:
        tb = n   # a block equal to the full array dim is always legal

    n_blocks = _cdiv(n, tb)
    ksteps = _cdiv(d, td)
    # For tiny N (single batch block) split the D reduction across a second
    # parallel grid axis so both v7x cores still get work.
    nsplits = 1 if n_blocks >= 2 else min(2, ksteps)
    kps = _cdiv(ksteps, nsplits)
    need_col_mask = (nsplits * kps * td) != d

    if nsplits * kps > ksteps:
        # Odd number of D blocks: clamp the replayed block index; its
        # contribution is zeroed by the in-kernel column mask.
        in_map = lambda c, i, k: (i, jnp.minimum(c * kps + k, ksteps - 1))
    else:
        in_map = lambda c, i, k: (i, c * kps + k)

    kernel = functools.partial(
        _bce_kernel,
        ignore_label=float(ignore_label),
        scale=float(weight) / float(d),   # mean over the full C*H*W
        d=d, td=td, ksteps_per_split=kps, need_col_mask=need_col_mask,
    )

    cost = pl.CostEstimate(
        flops=10 * n * d,
        transcendentals=2 * n * d,
        bytes_accessed=(pred2d.size * pred2d.dtype.itemsize
                        + label2d.size * label2d.dtype.itemsize + n * 4),
    )

    out = pl.pallas_call(
        kernel,
        out_shape=jax.ShapeDtypeStruct((nsplits, n, 1), jnp.float32),
        grid_spec=pltpu.PrefetchScalarGridSpec(
            num_scalar_prefetch=0,
            grid=(nsplits, n_blocks, kps),
            in_specs=[
                pl.BlockSpec((tb, td), in_map),
                pl.BlockSpec((tb, td), in_map),
            ],
            out_specs=pl.BlockSpec((None, tb, 1), lambda c, i, k: (c, i, 0)),
            scratch_shapes=[pltpu.VMEM((tb, 128), jnp.float32)],
        ),
        compiler_params=pltpu.CompilerParams(
            dimension_semantics=("parallel", "parallel", "arbitrary"),
            vmem_limit_bytes=32 * 1024 * 1024,
        ),
        cost_estimate=cost,
    )(pred2d, label2d)

    # Sum the (at most 2) D-split partials; tiny (nsplits, N, 1) array.
    return jnp.sum(out, axis=0)[:, 0]


def _reference(pred, label, *, ignore_label=-1, weight=1.0):
    # Pure-JAX reference mirroring the PyTorch forward (from_sigmoid=False).
    label = label.reshape(pred.shape).astype(jnp.float32)
    pred = pred.astype(jnp.float32)
    sw = (label != ignore_label).astype(jnp.float32)
    label = jnp.where(sw > 0, label, 0.0)
    loss = jnp.maximum(pred, 0.0) - pred * label + jnp.log1p(jnp.exp(-jnp.abs(pred)))
    loss = weight * (loss * sw)
    return jnp.mean(loss.reshape(pred.shape[0], -1), axis=1)


if __name__ == "__main__":
    key = jax.random.PRNGKey(0)
    k1, k2, k3 = jax.random.split(key, 3)

    N, C, H, W = 2, 4, 16, 16
    pred = jax.random.normal(k1, (N, C, H, W), dtype=jnp.float32) * 3.0
    # binary labels with some pixels set to the ignore_label (-1)
    label = (jax.random.uniform(k2, (N, C, H, W)) > 0.5).astype(jnp.float32)
    ignore_mask = jax.random.uniform(k3, (N, C, H, W)) < 0.1
    label = jnp.where(ignore_mask, -1.0, label)

    out = jax.block_until_ready(sigmoid_bce_loss(pred, label))
    ref = _reference(pred, label)
    assert out.shape == (N,)
    assert jnp.allclose(out, ref, atol=1e-5, rtol=1e-5), (out, ref)
    print("KERNEL_OK")
</pallas_src>

<mosaic_0001>
module attributes {stable_mosaic.version = 11 : i64} {
  func.func @_bce_kernel(%arg0: i32, %arg1: i32, %arg2: i32, %arg3: memref<2x1024xf32, #tpu.memory_space<vmem>>, %arg4: memref<2x1024xf32, #tpu.memory_space<vmem>>, %arg5: memref<1x2x1xf32, #tpu.memory_space<vmem>>, %arg6: memref<2x128xf32, #tpu.memory_space<vmem>>) attributes {dimension_semantics = [#tpu.dimension_semantics<parallel>, #tpu.dimension_semantics<parallel>, #tpu.dimension_semantics<arbitrary>], iteration_bounds = array<i64: 1, 1, 1>, scalar_prefetch = 0 : i64, scratch_operands = 1 : i64, tpu.core_type = #tpu.core_type<tc>, window_params = [{transform_indices = @transform_0, window_bounds = array<i64: 2, 1024>}, {transform_indices = @transform_1, window_bounds = array<i64: 2, 1024>}, {transform_indices = @transform_2, window_bounds = array<i64: 1, 2, 1>}]} {
    %c0_i32 = arith.constant 0 : i32
    %0 = arith.cmpi eq, %arg2, %c0_i32 : i32
    %1 = arith.extui %0 : i1 to i32
    %c0_i32_0 = arith.constant 0 : i32
    %2 = arith.cmpi ne, %1, %c0_i32_0 : i32
    scf.if %2 {
      %cst_13 = arith.constant 0.000000e+00 : f32
      %40 = vector.broadcast %cst_13 : f32 to vector<2x128xf32>
      %c0_14 = arith.constant 0 : index
      %c0_15 = arith.constant 0 : index
      %41 = vector.load %arg6[%c0_14, %c0_15] : memref<2x128xf32, #tpu.memory_space<vmem>>, vector<2x128xf32>
      tpu.vector_store %arg6[%c0_14, %c0_15], %40 {strides = array<i32>} : memref<2x128xf32, #tpu.memory_space<vmem>>, vector<2x128xf32>,
    } else {
    }
    %c0 = arith.constant 0 : index
    %c0_1 = arith.constant 0 : index
    %3 = vector.load %arg3[%c0, %c0_1] : memref<2x1024xf32, #tpu.memory_space<vmem>>, vector<2x1024xf32>
    %c0_2 = arith.constant 0 : index
    %c0_3 = arith.constant 0 : index
    %4 = vector.load %arg4[%c0_2, %c0_3] : memref<2x1024xf32, #tpu.memory_space<vmem>>, vector<2x1024xf32>
    %cst = arith.constant 0.000000e+00 : f32
    %5 = vector.broadcast %cst : f32 to vector<2x1024xf32>
    %6 = arith.maximumf %3, %5 : vector<2x1024xf32>
    %7 = arith.mulf %3, %4 : vector<2x1024xf32>
    %8 = arith.subf %6, %7 : vector<2x1024xf32>
    %9 = math.absf %3 : vector<2x1024xf32>
    %cst_4 = arith.constant 0.000000e+00 : f32
    %10 = vector.broadcast %cst_4 : f32 to vector<2x1024xf32>
    %11 = arith.subf %10, %9 : vector<2x1024xf32>
    %12 = math.exp %11 : vector<2x1024xf32>
    %13 = math.log1p %12 : vector<2x1024xf32>
    %14 = arith.addf %8, %13 : vector<2x1024xf32>
    %cst_5 = arith.constant -1.000000e+00 : f32
    %15 = vector.broadcast %cst_5 : f32 to vector<2x1024xf32>
    %16 = arith.cmpf one, %4, %15 : vector<2x1024xf32>
    %cst_6 = arith.constant 0.000000e+00 : f32
    %17 = vector.broadcast %cst_6 : f32 to vector<2x1024xf32>
    %18 = arith.select %16, %14, %17 : vector<2x1024xi1>, vector<2x1024xf32>
    %19 = vector.extract_strided_slice %18 {offsets = [0, 0], sizes = [2, 128], strides = [1, 1]} : vector<2x1024xf32> to vector<2x128xf32>
    %20 = vector.extract_strided_slice %18 {offsets = [0, 128], sizes = [2, 128], strides = [1, 1]} : vector<2x1024xf32> to vector<2x128xf32>
    %21 = vector.extract_strided_slice %18 {offsets = [0, 256], sizes = [2, 128], strides = [1, 1]} : vector<2x1024xf32> to vector<2x128xf32>
    %22 = vector.extract_strided_slice %18 {offsets = [0, 384], sizes = [2, 128], strides = [1, 1]} : vector<2x1024xf32> to vector<2x128xf32>
    %23 = vector.extract_strided_slice %18 {offsets = [0, 512], sizes = [2, 128], strides = [1, 1]} : vector<2x1024xf32> to vector<2x128xf32>
    %24 = vector.extract_strided_slice %18 {offsets = [0, 640], sizes = [2, 128], strides = [1, 1]} : vector<2x1024xf32> to vector<2x128xf32>
    %25 = vector.extract_strided_slice %18 {offsets = [0, 768], sizes = [2, 128], strides = [1, 1]} : vector<2x1024xf32> to vector<2x128xf32>
    %26 = vector.extract_strided_slice %18 {offsets = [0, 896], sizes = [2, 128], strides = [1, 1]} : vector<2x1024xf32> to vector<2x128xf32>
    %27 = arith.addf %19, %20 : vector<2x128xf32>
    %28 = arith.addf %21, %22 : vector<2x128xf32>
    %29 = arith.addf %23, %24 : vector<2x128xf32>
    %30 = arith.addf %25, %26 : vector<2x128xf32>
    %31 = arith.addf %27, %28 : vector<2x128xf32>
    %32 = arith.addf %29, %30 : vector<2x128xf32>
    %33 = arith.addf %31, %32 : vector<2x128xf32>
    %c0_7 = arith.constant 0 : index
    %c0_8 = arith.constant 0 : index
    %34 = vector.load %arg6[%c0_7, %c0_8] : memref<2x128xf32, #tpu.memory_space<vmem>>, vector<2x128xf32>
    %35 = arith.addf %34, %33 : vector<2x128xf32>
    %c0_9 = arith.constant 0 : index
    %c0_10 = arith.constant 0 : index
    %36 = vector.load %arg6[%c0_9, %c0_10] : memref<2x128xf32, #tpu.memory_space<vmem>>, vector<2x128xf32>
    tpu.vector_store %arg6[%c0_9, %c0_10], %35 {strides = array<i32>} : memref<2x128xf32, #tpu.memory_space<vmem>>, vector<2x128xf32>,
    %c0_i32_11 = arith.constant 0 : i32
    %37 = arith.cmpi eq, %arg2, %c0_i32_11 : i32
    %38 = arith.extui %37 : i1 to i32
    %c0_i32_12 = arith.constant 0 : i32
    %39 = arith.cmpi ne, %38, %c0_i32_12 : i32
    scf.if %39 {
      %c0_13 = arith.constant 0 : index
      %c0_14 = arith.constant 0 : index
      %40 = vector.load %arg6[%c0_13, %c0_14] : memref<2x128xf32, #tpu.memory_space<vmem>>, vector<2x128xf32>
      %cst_15 = arith.constant dense<0.000000e+00> : vector<2xf32>
      %41 = vector.multi_reduction <add>, %40, %cst_15 [1] : vector<2x128xf32> to vector<2xf32>
      %42 = vector.shape_cast %41 : vector<2xf32> to vector<2x1xf32>
      %cst_16 = arith.constant 9.765625E-4 : f32
      %43 = vector.broadcast %cst_16 : f32 to vector<2x1xf32>
      %44 = arith.mulf %42, %43 : vector<2x1xf32>
      %c0_17 = arith.constant 0 : index
      %c0_18 = arith.constant 0 : index
      %c0_19 = arith.constant 0 : index
      %45 = vector.load %arg5[%c0_17, %c0_18, %c0_19] : memref<1x2x1xf32, #tpu.memory_space<vmem>>, vector<1x2x1xf32>
      %46 = vector.shape_cast %45 : vector<1x2x1xf32> to vector<2x1xf32>
      %47 = vector.shape_cast %44 : vector<2x1xf32> to vector<1x2x1xf32>
      tpu.vector_store %arg5[%c0_17, %c0_18, %c0_19], %47 {strides = array<i32>} : memref<1x2x1xf32, #tpu.memory_space<vmem>>, vector<1x2x1xf32>,
    } else {
    }
    return
  }
  func.func @transform_0(%arg0: i32, %arg1: i32, %arg2: i32) -> (i32, i32) {
    %c1_i32 = arith.constant 1 : i32
    %0 = arith.muli %arg0, %c1_i32 : i32
    %1 = arith.addi %0, %arg2 : i32
    %c0_i32 = arith.constant 0 : i32
    return %arg1, %1 : i32, i32
  }
  func.func @transform_1(%arg0: i32, %arg1: i32, %arg2: i32) -> (i32, i32) {
    %c1_i32 = arith.constant 1 : i32
    %0 = arith.muli %arg0, %c1_i32 : i32
    %1 = arith.addi %0, %arg2 : i32
    %c0_i32 = arith.constant 0 : i32
    return %arg1, %1 : i32, i32
  }
  func.func @transform_2(%arg0: i32, %arg1: i32, %arg2: i32) -> (i32, i32, i32) {
    %c0_i32 = arith.constant 0 : i32
    %c0_i32_0 = arith.constant 0 : i32
    return %arg0, %arg1, %c0_i32 : i32, i32, i32
  }
}

</mosaic_0001>

<llo_original>
// kernel: tpu_custom_call.1
$region0: #{tpu_custom_call.1}
  #allocation0 [shape = 'u32[]', space=smem, size = 0x4, offset = 0x4, fixed_abs, tag = 'smem constant byte address 0x4 - core index']
  #allocation1 [shape = 'u32[144,128]{1,0:T(1,128)}', space=vmem, size = 0x12000, scoped, tag = 'internal scratch']
  #allocation2 [shape = 'f32[2,128]{1,0:T(2,128)}', space=vmem, size = 0x400, scoped, tag = 'scratch operand']
  %s0 = inlined_call_operand.hbm [shape: f32[2,1024], index: 0, kind: input, shape index: {}]
  %s1 = inlined_call_operand.hbm [shape: f32[2,1024], index: 1, kind: input, shape index: {}]
  %s2 = inlined_call_operand.vmem [shape: f32[1,2,1], index: 2, kind: output, shape index: {}]
  %s3 = sld [smem:[#allocation0]]
  $region34: #{tpu_custom_call.1} parent=0
    _
  %s5 = ssub.s32 1, %s3
  %s6 = scalar_select 0, %s5, %s3
  $region1: #{tpu_custom_call.1} parent=0
    #allocation3 [shape = 'u8[8192]{0}', space=vmem, size = 0x2000, scoped, tag = 'input window, operand 0, single buffered']
    #allocation4 [shape = 's32[1]{0}', space=sflag, size = 0x4, scoped, tag = 'scoped memory for tpu_custom_call.1']
    #allocation5 [shape = 'u8[8192]{0}', space=vmem, size = 0x2000, scoped, tag = 'input window, operand 1, single buffered']
    #allocation6 [shape = 's32[1]{0}', space=sflag, size = 0x4, scoped, tag = 'scoped memory for tpu_custom_call.1']
    %7 = vsyncpa [#allocation4], 0
    %8 = vsyncpa [#allocation6], 0
    // Predicated region
    $region2: #{tpu_custom_call.1} parent=1 // pred_check
      _
    $region3: #{tpu_custom_call.1} parent=1 // pred_check_branch
      %10 = sbr.rel (0) target = $region5
    $region4: #{tpu_custom_call.1} parent=1 // pred_region
      %s11 = sadd.s32 0, 0
      %s12 = smul.u32 8, %s11
      %s14 = ssub.s32 256, 256
      %15 = vsyncadd [#allocation4], %s14
      %s16 = smul.addr %s12, 32
      %s17 = scalar_lea.hbm %s0, %s16
      %s19 = sshll.u32 [#allocation3], 4
      %s20 = int_to_ptr.vmem [resolvable:$true] %s19
      %22 = dma.hbm_to_vmem [thread:$0]  %s17, 256, %s20, [#allocation4]
    $region5: #{tpu_custom_call.1} parent=1 // pred_fallthru
      _
    // Predicated region
    $region6: #{tpu_custom_call.1} parent=1 // pred_check
      _
    $region7: #{tpu_custom_call.1} parent=1 // pred_check_branch
      %24 = sbr.rel (0) target = $region9
    $region8: #{tpu_custom_call.1} parent=1 // pred_region
      %s25 = sadd.s32 0, 0
      %s26 = smul.u32 8, %s25
      %s28 = ssub.s32 256, 256
      %29 = vsyncadd [#allocation6], %s28
      %s30 = smul.addr %s26, 32
      %s31 = scalar_lea.hbm %s1, %s30
      %s33 = sshll.u32 [#allocation5], 4
      %s34 = int_to_ptr.vmem [resolvable:$true] %s33
      %36 = dma.hbm_to_vmem [thread:$0]  %s31, 256, %s34, [#allocation6]
    $region9: #{tpu_custom_call.1} parent=1 // pred_fallthru
      _
    // Predicated region
    $region10: #{tpu_custom_call.1} parent=1 // pred_check
      _
    $region11: #{tpu_custom_call.1} parent=1 // pred_check_branch
      %38 = sbr.rel (0) target = $region13
    $region12: #{tpu_custom_call.1} parent=1 // pred_region
      %39 = dma.done [#allocation4], 256
    $region13: #{tpu_custom_call.1} parent=1 // pred_fallthru
      _
    // Predicated region
    $region14: #{tpu_custom_call.1} parent=1 // pred_check
      _
    $region15: #{tpu_custom_call.1} parent=1 // pred_check_branch
      %41 = sbr.rel (0) target = $region17
    $region16: #{tpu_custom_call.1} parent=1 // pred_region
      %42 = dma.done [#allocation6], 256
    $region17: #{tpu_custom_call.1} parent=1 // pred_fallthru
      _
    %s43 = sadd.s32 0, 0
    %s44 = smul.u32 8, %s43
    %s45 = sadd.s32 0, 0
    %s46 = smul.u32 8, %s45
    %p47 = scmp.eq.s32.totalorder 0, 0
    // Predicated region
    $region18: #{tpu_custom_call.1} parent=1 // pred_check
      %p48 = pneg %p47
    $region19: #{tpu_custom_call.1} parent=1 // pred_check_branch
      %50 = sbr.rel (%p48) target = $region21
    $region20: #{tpu_custom_call.1} parent=1 // pred_region
      %51 = vst [vmem:[#allocation2] sm:$0x3] 0.0
    $region21: #{tpu_custom_call.1} parent=1 // pred_fallthru
      _
    %v52 = vld [vmem:[#allocation3] sm:$0xff]
    %v53 = vld [vmem:[#allocation3 + $0x8] sm:$0xff]
    %v54 = vld [vmem:[#allocation5] sm:$0xff]
    %v55 = vld [vmem:[#allocation5 + $0x8] sm:$0xff]
    %v56 = vmax.f32 %v52, 0.0
    %v57 = vmax.f32 %v53, 0.0
    %v58 = vmul.f32 %v52, %v54
    %v59 = vmul.f32 %v53, %v55
    %v60 = vsub.f32 %v56, %v58
    %v61 = vsub.f32 %v57, %v59
    %v62 = vand.u32 2147483647, %v52
    %v63 = vand.u32 2147483647, %v53
    %v64 = vsub.f32 0.0, %v62
    %v65 = vsub.f32 0.0, %v63
    %v66 = vmul.f32 %v64, 1.442695
    %v67 = vpow.pop %v66
    %v68 = vmul.f32 %v65, 1.442695
    %v69 = vpow.pop %v68
    %v70 = vadd.f32 %v67, 1.0
    %v71 = vlog2.pop %v70
    %v72 = vmul.f32 %v71, 0.6931472
    %v73 = vmul.f32 -0.5, %v67
    %v74 = vadd.f32 %v73, 1.0
    %v75 = vmul.f32 %v74, %v67
    %v76 = vand.u32 2147483647, %v67
    %vm77 = vcmp.lt.f32.partialorder %v76, 0.0004427343
    %v78 = vsel %vm77, %v75, %v72
    %v79 = vadd.f32 %v69, 1.0
    %v80 = vlog2.pop %v79
    %v81 = vmul.f32 %v80, 0.6931472
    %v82 = vmul.f32 -0.5, %v69
    %v83 = vadd.f32 %v82, 1.0
    %v84 = vmul.f32 %v83, %v69
    %v85 = vand.u32 2147483647, %v69
    %vm86 = vcmp.lt.f32.partialorder %v85, 0.0004427343
    %v87 = vsel %vm86, %v84, %v81
    %v88 = vadd.f32 %v60, %v78
    %v89 = vadd.f32 %v61, %v87
    %vm90 = vcmp.ne.f32.partialorder %v54, -1.0
    %vm91 = vcmp.ne.f32.partialorder %v55, -1.0
    %v92 = vsel %vm90, %v88, 0.0
    %v93 = vsel %vm91, %v89, 0.0
    %v95 = vrot.slane %v92, 2
    %v97 = vadd.f32 %v92, %v95
    %v98 = vrot.slane %v92, 4
    %v100 = vrot.slane %v92, 6
    %v102 = vadd.f32 %v98, %v100
    %v104 = vrot.slane %v93, 2
    %v106 = vadd.f32 %v93, %v104
    %v107 = vrot.slane %v93, 4
    %v109 = vrot.slane %v93, 6
    %v111 = vadd.f32 %v107, %v109
    %v112 = vadd.f32 %v97, %v102
    %v113 = vadd.f32 %v106, %v111
    %v114 = vadd.f32 %v112, %v113
    %v115 = vld [vmem:[#allocation2] sm:$0x3]
    %v116 = vadd.f32 %v115, %v114
    %117 = vst [vmem:[#allocation2] sm:$0x3] %v116
    // Predicated region
    $region22: #{tpu_custom_call.1} parent=1 // pred_check
      %p118 = pneg %p47
    $region23: #{tpu_custom_call.1} parent=1 // pred_check_branch
      %120 = sbr.rel (%p118) target = $region25
    $region24: #{tpu_custom_call.1} parent=1 // pred_region
      %v121 = vld [vmem:[#allocation2] sm:$0x3]
      %vm122 = vcmask 1041408
      %v123 = vsel %vm122, %v121, 0.0
      %124 = vadd.xlane.f32.xlu0 %v123
      %v125 = vpop.xlane.xlu0 %124
      %v126 = vmul.f32 %v125, 0.0009765625
      %vm127 = vcmask 1024
      %128 = vst.msk [vmem:[%s2] sm:$0x3] %vm127, %v126
    $region25: #{tpu_custom_call.1} parent=1 // pred_fallthru
      _
    // Predicated region
    $region26: #{tpu_custom_call.1} parent=1 // pred_check
      _
    $region27: #{tpu_custom_call.1} parent=1 // pred_check_branch
      %130 = sbr.rel (0) target = $region29
    $region28: #{tpu_custom_call.1} parent=1 // pred_region
      _
    $region29: #{tpu_custom_call.1} parent=1 // pred_fallthru
      _
    // Predicated region
    $region30: #{tpu_custom_call.1} parent=1 // pred_check
      _
    $region31: #{tpu_custom_call.1} parent=1 // pred_check_branch
      %132 = sbr.rel (0) target = $region33
    $region32: #{tpu_custom_call.1} parent=1 // pred_region
      _
    $region33: #{tpu_custom_call.1} parent=1 // pred_fallthru
      _
    %133 = vsyncpa [#allocation4], 1
    %134 = vsyncpa [#allocation6], 1

</llo_original>
